<compile_context>
chip_gen: v7x
topology: tpu7x:2x2x1
jax: 0.10.0
libtpu: 0.0.40
codegen_flags: <defaults>
</compile_context>

<pallas_src>
import jax
import jax.numpy as jnp
from jax import lax
from jax.experimental import pallas as pl
from jax.experimental.pallas import tpu as pltpu

H1, H2 = 120, 84          # logical hidden widths from the PyTorch module
LANE = 128                # TPU lane width
SUBLANE = 8               # sublane multiple


def _round_up(x, m):
    return (x + m - 1) // m * m


def qnet_kernel(x_ref, w1_ref, b1_ref, w2_ref, b2_ref, w3_ref, b3_ref, o_ref):
    """One batch tile of the 3-layer MLP.  All operands already in VMEM.

    x: (tile_b, obs_pad) bf16; w1/w2: bf16 (in_pad, out_pad); w3: bf16
    (act_pad, h2_pad); b1/b2: f32 (1, out_pad); b3: f32 (act_pad, 1).
    Output o: (act_pad, tile_b) f32 (feature-major, batch on the lane axis).
    """
    x = x_ref[...]
    h1 = jnp.dot(x, w1_ref[...], preferred_element_type=jnp.float32)
    h1 = jnp.maximum(h1 + b1_ref[...], 0.0)
    h2 = jnp.dot(h1.astype(jnp.bfloat16), w2_ref[...],
                 preferred_element_type=jnp.float32)
    h2 = jnp.maximum(h2 + b2_ref[...], 0.0)
    # Feature-major final layer: contract the hidden dim of both operands so
    # the result is (act_pad, tile_b) -- small sublane dim, lane-dense store.
    out_t = lax.dot_general(
        w3_ref[...], h2.astype(jnp.bfloat16),
        dimension_numbers=(((1,), (1,)), ((), ())),
        preferred_element_type=jnp.float32)
    o_ref[...] = (out_t + b3_ref[...]).astype(o_ref.dtype)


def qnetwork_forward(x, params, n_actions, *, tile_b_max=4096):
    """Forward pass. x: (batch, obs_dim) f32. Returns (batch, n_actions) f32."""
    w1, b1, w2, b2, w3, b3 = params
    batch, obs_dim = x.shape
    obs_pad, h1p = w1.shape
    h2p = w2.shape[1]
    act_pad = w3.shape[0]

    # Batch maps to the lane axis of the feature-major output: pad it to a
    # multiple of 128 (unmasked, lane-dense stores).  Pick tile_b so padding
    # waste is bounded (<128 rows + tile round-up) and force >=2 grid steps
    # for larger batches so v7x's two TensorCores both get work.
    padded_batch = _round_up(batch, LANE)
    num_tiles = pl.cdiv(padded_batch, min(tile_b_max, padded_batch))
    if num_tiles == 1 and padded_batch > 2 * LANE:
        num_tiles = 2
    tile_b = _round_up(pl.cdiv(padded_batch, num_tiles), LANE)
    padded_batch = num_tiles * tile_b
    grid = (num_tiles,)

    # bf16 x halves the input DMA; zero padding is mathematically inert.
    x = x.astype(jnp.bfloat16)
    x = jnp.pad(x, ((0, padded_batch - batch), (0, obs_pad - obs_dim)))

    weight_bytes = sum(int(p.size) * p.dtype.itemsize for p in params)
    flops = 2 * padded_batch * (obs_pad * h1p + h1p * h2p + h2p * act_pad)
    bytes_accessed = (x.size * 2                      # bf16 activations in
                      + padded_batch * act_pad * 4    # f32 Q-values out
                      + weight_bytes)

    # VMEM estimate: double-buffered x/out streams + resident weights + the
    # f32/bf16 activation temporaries, with 2x headroom.  Clamp to 48 MiB so
    # it always fits v7x's 64 MiB physical VMEM (v5e/v6e have 128 MiB).
    stream_bytes = 2 * (tile_b * obs_pad * 2 + act_pad * tile_b * 4)
    temp_bytes = tile_b * (h1p + h2p) * 6
    vmem_limit = int(min(max(2 * (stream_bytes + 2 * weight_bytes + temp_bytes),
                             32 << 20), 48 << 20))

    out_t = pl.pallas_call(
        qnet_kernel,
        out_shape=jax.ShapeDtypeStruct((act_pad, padded_batch), jnp.float32),
        grid=grid,
        in_specs=[
            # x streams through the pipeline, one batch tile per grid step.
            pl.BlockSpec((tile_b, obs_pad), lambda i: (i, 0)),
            # Weights / biases: constant block index -> resident in VMEM.
            pl.BlockSpec((obs_pad, h1p), lambda i: (0, 0)),
            pl.BlockSpec((1, h1p), lambda i: (0, 0)),
            pl.BlockSpec((h1p, h2p), lambda i: (0, 0)),
            pl.BlockSpec((1, h2p), lambda i: (0, 0)),
            pl.BlockSpec((act_pad, h2p), lambda i: (0, 0)),
            pl.BlockSpec((act_pad, 1), lambda i: (0, 0)),
        ],
        out_specs=pl.BlockSpec((act_pad, tile_b), lambda i: (0, i)),
        compiler_params=pltpu.CompilerParams(
            dimension_semantics=("parallel",),
            vmem_limit_bytes=vmem_limit),
        cost_estimate=pl.CostEstimate(
            flops=flops, transcendentals=0, bytes_accessed=bytes_accessed),
    )(x, w1, b1, w2, b2, w3, b3)

    # (act_pad, padded_batch) -> (batch, n_actions); tiny transpose in XLA.
    return out_t[:n_actions, :batch].T


def init_params(key, obs_dim, n_actions):
    """PyTorch-Linear-style init (uniform +-1/sqrt(fan_in)), zero-padded to
    TPU-aligned shapes.  Layers 1 & 2 stored (in_pad, out_pad) with out_pad
    lane-padded to 128; layer 3 stored PyTorch-native (out, in) with out
    padded only to 8 sublanes.  Weights bf16 (MXU operands), biases f32."""
    obs_pad = _round_up(obs_dim, SUBLANE)
    h1p = _round_up(H1, LANE)
    h2p = _round_up(H2, LANE)
    act_pad = _round_up(n_actions, SUBLANE)

    key, k1w, k1b, k2w, k2b, k3w, k3b = jax.random.split(key, 7)

    def _linear(kw, kb, fan_in, fan_out):
        bound = 1.0 / float(fan_in) ** 0.5
        w = jax.random.uniform(kw, (fan_in, fan_out), jnp.float32, -bound, bound)
        b = jax.random.uniform(kb, (fan_out,), jnp.float32, -bound, bound)
        return w, b

    w1, b1 = _linear(k1w, k1b, obs_dim, H1)
    w1p = jnp.zeros((obs_pad, h1p), jnp.float32).at[:obs_dim, :H1].set(w1)
    b1p = jnp.zeros((1, h1p), jnp.float32).at[0, :H1].set(b1)

    w2, b2 = _linear(k2w, k2b, H1, H2)
    w2p = jnp.zeros((h1p, h2p), jnp.float32).at[:H1, :H2].set(w2)
    b2p = jnp.zeros((1, h2p), jnp.float32).at[0, :H2].set(b2)

    w3, b3 = _linear(k3w, k3b, H2, n_actions)
    w3p = jnp.zeros((act_pad, h2p), jnp.float32).at[:n_actions, :H2].set(w3.T)
    b3p = jnp.zeros((act_pad, 1), jnp.float32).at[:n_actions, 0].set(b3)

    return [w1p.astype(jnp.bfloat16), b1p,
            w2p.astype(jnp.bfloat16), b2p,
            w3p.astype(jnp.bfloat16), b3p]


def reference_forward(x, params, n_actions):
    """Pure-JAX reference with identical math (bf16 MXU operands, f32 acc)."""
    w1, b1, w2, b2, w3, b3 = params
    obs_pad = w1.shape[0]
    x = x.astype(jnp.bfloat16)
    x = jnp.pad(x, ((0, 0), (0, obs_pad - x.shape[1])))
    h1 = jnp.maximum(
        jnp.dot(x, w1, preferred_element_type=jnp.float32) + b1, 0.0)
    h2 = jnp.maximum(
        jnp.dot(h1.astype(jnp.bfloat16), w2,
                preferred_element_type=jnp.float32) + b2, 0.0)
    out = jnp.dot(h2.astype(jnp.bfloat16), w3.T,
                  preferred_element_type=jnp.float32) + b3.T
    return out[:, :n_actions]


if __name__ == "__main__":
    # Small env-like shapes: obs_dim=4 (CartPole-style observation), 2 actions.
    batch, obs_dim, n_actions = 8, 4, 2

    key = jax.random.PRNGKey(0)
    key, kx = jax.random.split(key)
    x = jax.random.normal(kx, (batch, obs_dim), jnp.float32)
    params = init_params(key, obs_dim, n_actions)

    out = qnetwork_forward(x, params, n_actions)
    out = jax.block_until_ready(out)

    ref = reference_forward(x, params, n_actions)
    assert out.shape == (batch, n_actions)
    assert jnp.allclose(out, ref, atol=1e-3, rtol=1e-3), float(
        jnp.max(jnp.abs(out - ref)))

    print("KERNEL_OK")
</pallas_src>

<mosaic_0001>
module attributes {stable_mosaic.version = 11 : i64} {
  func.func @qnet_kernel(%arg0: i32, %arg1: memref<128x8xbf16, #tpu.memory_space<vmem>>, %arg2: memref<8x128xbf16, #tpu.memory_space<vmem>>, %arg3: memref<1x128xf32, #tpu.memory_space<vmem>>, %arg4: memref<128x128xbf16, #tpu.memory_space<vmem>>, %arg5: memref<1x128xf32, #tpu.memory_space<vmem>>, %arg6: memref<8x128xbf16, #tpu.memory_space<vmem>>, %arg7: memref<8x1xf32, #tpu.memory_space<vmem>>, %arg8: memref<8x128xf32, #tpu.memory_space<vmem>>) attributes {dimension_semantics = [#tpu.dimension_semantics<parallel>], iteration_bounds = array<i64: 1>, scalar_prefetch = 0 : i64, scratch_operands = 0 : i64, tpu.core_type = #tpu.core_type<tc>, window_params = [{transform_indices = @transform_0, window_bounds = array<i64: 128, 8>}, {pipeline_mode = #tpu.pipeline_mode<synchronous>, transform_indices = @transform_1, window_bounds = array<i64: 8, 128>}, {pipeline_mode = #tpu.pipeline_mode<synchronous>, transform_indices = @transform_2, window_bounds = array<i64: 1, 128>}, {pipeline_mode = #tpu.pipeline_mode<synchronous>, transform_indices = @transform_3, window_bounds = array<i64: 128, 128>}, {pipeline_mode = #tpu.pipeline_mode<synchronous>, transform_indices = @transform_4, window_bounds = array<i64: 1, 128>}, {pipeline_mode = #tpu.pipeline_mode<synchronous>, transform_indices = @transform_5, window_bounds = array<i64: 8, 128>}, {pipeline_mode = #tpu.pipeline_mode<synchronous>, transform_indices = @transform_6, window_bounds = array<i64: 8, 1>}, {transform_indices = @transform_7, window_bounds = array<i64: 8, 128>}]} {
    %c0 = arith.constant 0 : index
    %c0_0 = arith.constant 0 : index
    %0 = vector.load %arg1[%c0, %c0_0] : memref<128x8xbf16, #tpu.memory_space<vmem>>, vector<128x8xbf16>
    %c0_1 = arith.constant 0 : index
    %c0_2 = arith.constant 0 : index
    %1 = vector.load %arg2[%c0_1, %c0_2] : memref<8x128xbf16, #tpu.memory_space<vmem>>, vector<8x128xbf16>
    %cst = arith.constant dense<0.000000e+00> : vector<128x128xf32>
    %2 = tpu.matmul %0, %1, %cst {dimension_numbers = #tpu.dot_dimension_numbers<[1], [0], [0], [1], [0, 0, 1, 1], [], []>} : vector<128x8xbf16>, vector<8x128xbf16>, vector<128x128xf32> -> vector<128x128xf32>
    %c0_3 = arith.constant 0 : index
    %c0_4 = arith.constant 0 : index
    %3 = vector.load %arg3[%c0_3, %c0_4] : memref<1x128xf32, #tpu.memory_space<vmem>>, vector<1x128xf32>
    %4 = vector.broadcast %3 : vector<1x128xf32> to vector<128x128xf32>
    %5 = arith.addf %2, %4 : vector<128x128xf32>
    %cst_5 = arith.constant 0.000000e+00 : f32
    %6 = vector.broadcast %cst_5 : f32 to vector<128x128xf32>
    %7 = arith.maximumf %5, %6 : vector<128x128xf32>
    %8 = arith.truncf %7 : vector<128x128xf32> to vector<128x128xbf16>
    %c0_6 = arith.constant 0 : index
    %c0_7 = arith.constant 0 : index
    %9 = vector.load %arg4[%c0_6, %c0_7] : memref<128x128xbf16, #tpu.memory_space<vmem>>, vector<128x128xbf16>
    %cst_8 = arith.constant dense<0.000000e+00> : vector<128x128xf32>
    %10 = tpu.matmul %8, %9, %cst_8 {dimension_numbers = #tpu.dot_dimension_numbers<[1], [0], [0], [1], [0, 0, 1, 1], [], []>} : vector<128x128xbf16>, vector<128x128xbf16>, vector<128x128xf32> -> vector<128x128xf32>
    %c0_9 = arith.constant 0 : index
    %c0_10 = arith.constant 0 : index
    %11 = vector.load %arg5[%c0_9, %c0_10] : memref<1x128xf32, #tpu.memory_space<vmem>>, vector<1x128xf32>
    %12 = vector.broadcast %11 : vector<1x128xf32> to vector<128x128xf32>
    %13 = arith.addf %10, %12 : vector<128x128xf32>
    %cst_11 = arith.constant 0.000000e+00 : f32
    %14 = vector.broadcast %cst_11 : f32 to vector<128x128xf32>
    %15 = arith.maximumf %13, %14 : vector<128x128xf32>
    %c0_12 = arith.constant 0 : index
    %c0_13 = arith.constant 0 : index
    %16 = vector.load %arg6[%c0_12, %c0_13] : memref<8x128xbf16, #tpu.memory_space<vmem>>, vector<8x128xbf16>
    %17 = arith.truncf %15 : vector<128x128xf32> to vector<128x128xbf16>
    %cst_14 = arith.constant dense<0.000000e+00> : vector<8x128xf32>
    %18 = tpu.matmul %16, %17, %cst_14 {dimension_numbers = #tpu.dot_dimension_numbers<[1], [1], [0], [0], [0, 0, 1, 0], [], []>} : vector<8x128xbf16>, vector<128x128xbf16>, vector<8x128xf32> -> vector<8x128xf32>
    %c0_15 = arith.constant 0 : index
    %c0_16 = arith.constant 0 : index
    %19 = vector.load %arg7[%c0_15, %c0_16] : memref<8x1xf32, #tpu.memory_space<vmem>>, vector<8x1xf32>
    %20 = vector.broadcast %19 : vector<8x1xf32> to vector<8x128xf32>
    %21 = arith.addf %18, %20 : vector<8x128xf32>
    %c0_17 = arith.constant 0 : index
    %c0_18 = arith.constant 0 : index
    %22 = vector.load %arg8[%c0_17, %c0_18] : memref<8x128xf32, #tpu.memory_space<vmem>>, vector<8x128xf32>
    tpu.vector_store %arg8[%c0_17, %c0_18], %21 {strides = array<i32>} : memref<8x128xf32, #tpu.memory_space<vmem>>, vector<8x128xf32>,
    return
  }
  func.func @transform_0(%arg0: i32) -> (i32, i32) {
    %c0_i32 = arith.constant 0 : i32
    %c0_i32_0 = arith.constant 0 : i32
    return %arg0, %c0_i32 : i32, i32
  }
  func.func @transform_1(%arg0: i32) -> (i32, i32) {
    %c0_i32 = arith.constant 0 : i32
    %c0_i32_0 = arith.constant 0 : i32
    %c0_i32_1 = arith.constant 0 : i32
    return %c0_i32, %c0_i32_0 : i32, i32
  }
  func.func @transform_2(%arg0: i32) -> (i32, i32) {
    %c0_i32 = arith.constant 0 : i32
    %c0_i32_0 = arith.constant 0 : i32
    %c0_i32_1 = arith.constant 0 : i32
    return %c0_i32, %c0_i32_0 : i32, i32
  }
  func.func @transform_3(%arg0: i32) -> (i32, i32) {
    %c0_i32 = arith.constant 0 : i32
    %c0_i32_0 = arith.constant 0 : i32
    %c0_i32_1 = arith.constant 0 : i32
    return %c0_i32, %c0_i32_0 : i32, i32
  }
  func.func @transform_4(%arg0: i32) -> (i32, i32) {
    %c0_i32 = arith.constant 0 : i32
    %c0_i32_0 = arith.constant 0 : i32
    %c0_i32_1 = arith.constant 0 : i32
    return %c0_i32, %c0_i32_0 : i32, i32
  }
  func.func @transform_5(%arg0: i32) -> (i32, i32) {
    %c0_i32 = arith.constant 0 : i32
    %c0_i32_0 = arith.constant 0 : i32
    %c0_i32_1 = arith.constant 0 : i32
    return %c0_i32, %c0_i32_0 : i32, i32
  }
  func.func @transform_6(%arg0: i32) -> (i32, i32) {
    %c0_i32 = arith.constant 0 : i32
    %c0_i32_0 = arith.constant 0 : i32
    %c0_i32_1 = arith.constant 0 : i32
    return %c0_i32, %c0_i32_0 : i32, i32
  }
  func.func @transform_7(%arg0: i32) -> (i32, i32) {
    %c0_i32 = arith.constant 0 : i32
    %c0_i32_0 = arith.constant 0 : i32
    return %c0_i32, %arg0 : i32, i32
  }
}

</mosaic_0001>

<llo_original>
// kernel: tpu_custom_call.1
$region0: #{tpu_custom_call.1}
  #allocation0 [shape = 'u32[]', space=smem, size = 0x4, offset = 0x4, fixed_abs, tag = 'smem constant byte address 0x4 - core index']
  #allocation1 [shape = 'u32[144,128]{1,0:T(1,128)}', space=vmem, size = 0x12000, scoped, tag = 'internal scratch']
  %s0 = inlined_call_operand.vmem [shape: bf16[128,8], index: 0, kind: input, shape index: {}]
  %s1 = inlined_call_operand.vmem [shape: bf16[8,128], index: 1, kind: input, shape index: {}]
  %s2 = inlined_call_operand.vmem [shape: f32[1,128], index: 2, kind: input, shape index: {}]
  %s3 = inlined_call_operand.vmem [shape: bf16[128,128], index: 3, kind: input, shape index: {}]
  %s4 = inlined_call_operand.vmem [shape: f32[1,128], index: 4, kind: input, shape index: {}]
  %s5 = inlined_call_operand.vmem [shape: bf16[8,128], index: 5, kind: input, shape index: {}]
  %s6 = inlined_call_operand.vmem [shape: f32[8,1], index: 6, kind: input, shape index: {}]
  %s7 = inlined_call_operand.hbm [shape: f32[8,128], index: 7, kind: output, shape index: {}]
  %s8 = sld [smem:[#allocation0]]
  $region38: #{tpu_custom_call.1} parent=0
    _
  %s10 = ssub.s32 1, %s8
  %s11 = scalar_select 0, %s10, %s8
  $region1: #{tpu_custom_call.1} parent=0
    #allocation2 [shape = 'u8[4096]{0}', space=vmem, size = 0x1000, scoped, tag = 'output window, operand 0, single buffered']
    #allocation3 [shape = 's32[1]{0}', space=sflag, size = 0x4, scoped, tag = 'scoped memory for tpu_custom_call.1']
    %12 = vsyncpa [#allocation3], 0
    // Predicated region
    $region2: #{tpu_custom_call.1} parent=1 // pred_check
      _
    $region3: #{tpu_custom_call.1} parent=1 // pred_check_branch
      %14 = sbr.rel (0) target = $region5
    $region4: #{tpu_custom_call.1} parent=1 // pred_region
      _
    $region5: #{tpu_custom_call.1} parent=1 // pred_fallthru
      _
    // Predicated region
    $region6: #{tpu_custom_call.1} parent=1 // pred_check
      _
    $region7: #{tpu_custom_call.1} parent=1 // pred_check_branch
      %16 = sbr.rel (0) target = $region9
    $region8: #{tpu_custom_call.1} parent=1 // pred_region
      _
    $region9: #{tpu_custom_call.1} parent=1 // pred_fallthru
      _
    // Predicated region
    $region10: #{tpu_custom_call.1} parent=1 // pred_check
      _
    $region11: #{tpu_custom_call.1} parent=1 // pred_check_branch
      %18 = sbr.rel (0) target = $region13
    $region12: #{tpu_custom_call.1} parent=1 // pred_region
      _
    $region13: #{tpu_custom_call.1} parent=1 // pred_fallthru
      _
    // Predicated region
    $region14: #{tpu_custom_call.1} parent=1 // pred_check
      _
    $region15: #{tpu_custom_call.1} parent=1 // pred_check_branch
      %20 = sbr.rel (0) target = $region17
    $region16: #{tpu_custom_call.1} parent=1 // pred_region
      _
    $region17: #{tpu_custom_call.1} parent=1 // pred_fallthru
      _
    // Predicated region
    $region18: #{tpu_custom_call.1} parent=1 // pred_check
      _
    $region19: #{tpu_custom_call.1} parent=1 // pred_check_branch
      %22 = sbr.rel (0) target = $region21
    $region20: #{tpu_custom_call.1} parent=1 // pred_region
      _
    $region21: #{tpu_custom_call.1} parent=1 // pred_fallthru
      _
    // Predicated region
    $region22: #{tpu_custom_call.1} parent=1 // pred_check
      _
    $region23: #{tpu_custom_call.1} parent=1 // pred_check_branch
      %24 = sbr.rel (0) target = $region25
    $region24: #{tpu_custom_call.1} parent=1 // pred_region
      _
    $region25: #{tpu_custom_call.1} parent=1 // pred_fallthru
      _
    // Predicated region
    $region26: #{tpu_custom_call.1} parent=1 // pred_check
      _
    $region27: #{tpu_custom_call.1} parent=1 // pred_check_branch
      %26 = sbr.rel (0) target = $region29
    $region28: #{tpu_custom_call.1} parent=1 // pred_region
      _
    $region29: #{tpu_custom_call.1} parent=1 // pred_fallthru
      _
    %v28 = vld [vmem:[%s0] sm:$0xf]
    %v29 = vld [vmem:[%s0 + $0x4] sm:$0xf]
    %v30 = vld [vmem:[%s0 + $0x8] sm:$0xf]
    %v31 = vld [vmem:[%s0 + $0xc] sm:$0xf]
    %v32 = vld [vmem:[%s0 + $0x10] sm:$0xf]
    %v33 = vld [vmem:[%s0 + $0x14] sm:$0xf]
    %v34 = vld [vmem:[%s0 + $0x18] sm:$0xf]
    %v35 = vld [vmem:[%s0 + $0x1c] sm:$0xf]
    %v36 = vld [vmem:[%s0 + $0x20] sm:$0xf]
    %v37 = vld [vmem:[%s0 + $0x24] sm:$0xf]
    %v38 = vld [vmem:[%s0 + $0x28] sm:$0xf]
    %v39 = vld [vmem:[%s0 + $0x2c] sm:$0xf]
    %v40 = vld [vmem:[%s0 + $0x30] sm:$0xf]
    %v41 = vld [vmem:[%s0 + $0x34] sm:$0xf]
    %v42 = vld [vmem:[%s0 + $0x38] sm:$0xf]
    %v43 = vld [vmem:[%s0 + $0x3c] sm:$0xf]
    %v44 = vld [vmem:[%s1] sm:$0xf]
    %v45 = vld [vmem:[%s2] sm:$0x1]
    %v47 = vlaneseq
    %v48 = vshrl.u32 %v47, 7
    %v49 = vsub.s32 0, %v48
    %v50 = vrot.slane %v45, %v49
    %v68 = vunpack.c.l.b16 %v28
    %v69 = vunpack.c.l.b16 %v29
    %v70 = vunpack.c.l.b16 %v30
    %v71 = vunpack.c.l.b16 %v31
    %v72 = vunpack.c.l.b16 %v32
    %v73 = vunpack.c.l.b16 %v33
    %v74 = vunpack.c.l.b16 %v34
    %v75 = vunpack.c.l.b16 %v35
    %v76 = vunpack.c.l.b16 %v36
    %v77 = vunpack.c.l.b16 %v37
    %v78 = vunpack.c.l.b16 %v38
    %v79 = vunpack.c.l.b16 %v39
    %v80 = vunpack.c.l.b16 %v40
    %v81 = vunpack.c.l.b16 %v41
    %v82 = vunpack.c.l.b16 %v42
    %v83 = vunpack.c.l.b16 %v43
    %v84 = vpack.c.b16 %v69, %v68
    %v85 = vpack.c.b16 %v71, %v70
    %v86 = vpack.c.b16 %v73, %v72
    %v87 = vpack.c.b16 %v75, %v74
    %v88 = vpack.c.b16 %v77, %v76
    %v89 = vpack.c.b16 %v79, %v78
    %v90 = vpack.c.b16 %v81, %v80
    %v91 = vpack.c.b16 %v83, %v82
    %vm92 = vcmask 64512
    %v94 = vsel %vm92, %v84, 0
    %v97 = vsel %vm92, %v85, 0
    %v100 = vsel %vm92, %v86, 0
    %v103 = vsel %vm92, %v87, 0
    %v106 = vsel %vm92, %v88, 0
    %v109 = vsel %vm92, %v89, 0
    %v112 = vsel %vm92, %v90, 0
    %v115 = vsel %vm92, %v91, 0
    %vm117 = vcmask 1043456
    %v119 = vsel %vm117, %v44, 0
    %121 = vmatprep.subr.bf16.mxu0 0
    %122 = vmatpush1.bf16.msra.mxu0 %v119
    %123 = vmatprep.subr.bf16.mxu0 0
    %124 = vmatpush1.bf16.msra.mxu0 0
    %125 = vmatprep.subr.bf16.mxu0 0
    %126 = vmatpush1.bf16.msra.mxu0 0
    %127 = vmatprep.subr.bf16.mxu0 0
    %128 = vmatpush1.bf16.msra.mxu0 0
    %129 = vmatprep.subr.bf16.mxu0 0
    %130 = vmatpush1.bf16.msra.mxu0 0
    %131 = vmatprep.subr.bf16.mxu0 0
    %132 = vmatpush1.bf16.msra.mxu0 0
    %133 = vmatprep.subr.bf16.mxu0 0
    %134 = vmatpush1.bf16.msra.mxu0 0
    %135 = vmatprep.subr.bf16.mxu0 0
    %136 = vmatpush1.bf16.msra.mxu0 0
    %137 = vmatprep.subr.bf16.mxu0 0
    %138 = vmatpush1.bf16.msra.mxu0 0
    %139 = vmatprep.subr.bf16.mxu0 0
    %140 = vmatpush1.bf16.msra.mxu0 0
    %141 = vmatprep.subr.bf16.mxu0 0
    %142 = vmatpush1.bf16.msra.mxu0 0
    %143 = vmatprep.subr.bf16.mxu0 0
    %144 = vmatpush1.bf16.msra.mxu0 0
    %145 = vmatprep.subr.bf16.mxu0 0
    %146 = vmatpush1.bf16.msra.mxu0 0
    %147 = vmatprep.subr.bf16.mxu0 0
    %148 = vmatpush1.bf16.msra.mxu0 0
    %149 = vmatprep.subr.bf16.mxu0 0
    %150 = vmatpush1.bf16.msra.mxu0 0
    %151 = vmatprep.subr.bf16.mxu0 0
    %152 = vmatpush1.bf16.msra.mxu0 0
    %153 = vmatprep.mubr.bf16.mxu0 0
    %154 = vmatmul.mubr.bf16.gmra.mrb[0].mxu0 %v94
    %v155 = vpop.f32.mrb[0].mxu0
    %v156 = vadd.f32 %v50, %v155
    %v157 = vpop.f32.mrb[0].mxu0
    %v158 = vpop.f32.mrb[0].mxu0
    %v159 = vadd.f32 %v50, %v158
    %v160 = vpop.f32.mrb[0].mxu0
    %161 = vmatprep.mubr.bf16.mxu0 0
    %162 = vmatmul.mubr.bf16.gmra.mrb[0].mxu0 %v97
    %v163 = vpop.f32.mrb[0].mxu0
    %v164 = vadd.f32 %v50, %v163
    %v165 = vpop.f32.mrb[0].mxu0
    %v166 = vpop.f32.mrb[0].mxu0
    %v167 = vadd.f32 %v50, %v166
    %v168 = vpop.f32.mrb[0].mxu0
    %169 = vmatprep.mubr.bf16.mxu0 0
    %170 = vmatmul.mubr.bf16.gmra.mrb[0].mxu0 %v100
    %v171 = vpop.f32.mrb[0].mxu0
    %v172 = vadd.f32 %v50, %v171
    %v173 = vpop.f32.mrb[0].mxu0
    %v174 = vpop.f32.mrb[0].mxu0
    %v175 = vadd.f32 %v50, %v174
    %v176 = vpop.f32.mrb[0].mxu0
    %177 = vmatprep.mubr.bf16.mxu0 0
    %178 = vmatmul.mubr.bf16.gmra.mrb[0].mxu0 %v103
    %v179 = vpop.f32.mrb[0].mxu0
    %v180 = vadd.f32 %v50, %v179
    %v181 = vpop.f32.mrb[0].mxu0
    %v182 = vpop.f32.mrb[0].mxu0
    %v183 = vadd.f32 %v50, %v182
    %v184 = vpop.f32.mrb[0].mxu0
    %185 = vmatprep.mubr.bf16.mxu0 0
    %186 = vmatmul.mubr.bf16.gmra.mrb[0].mxu0 %v106
    %v187 = vpop.f32.mrb[0].mxu0
    %v188 = vadd.f32 %v50, %v187
    %v189 = vpop.f32.mrb[0].mxu0
    %v190 = vpop.f32.mrb[0].mxu0
    %v191 = vadd.f32 %v50, %v190
    %v192 = vpop.f32.mrb[0].mxu0
    %193 = vmatprep.mubr.bf16.mxu0 0
    %194 = vmatmul.mubr.bf16.gmra.mrb[0].mxu0 %v109
    %v195 = vpop.f32.mrb[0].mxu0
    %v196 = vadd.f32 %v50, %v195
    %v197 = vpop.f32.mrb[0].mxu0
    %v198 = vpop.f32.mrb[0].mxu0
    %v199 = vadd.f32 %v50, %v198
    %v200 = vpop.f32.mrb[0].mxu0
    %201 = vmatprep.mubr.bf16.mxu0 0
    %202 = vmatmul.mubr.bf16.gmra.mrb[0].mxu0 %v112
    %v203 = vpop.f32.mrb[0].mxu0
    %v204 = vadd.f32 %v50, %v203
    %v205 = vpop.f32.mrb[0].mxu0
    %v206 = vpop.f32.mrb[0].mxu0
    %v207 = vadd.f32 %v50, %v206
    %v208 = vpop.f32.mrb[0].mxu0
    %209 = vmatprep.mubr.bf16.mxu0 0
    %210 = vmatmul.mubr.bf16.gmra.mrb[0].mxu0 %v115
    %v211 = vpop.f32.mrb[0].mxu0
    %v212 = vadd.f32 %v50, %v211
    %v213 = vpop.f32.mrb[0].mxu0
    %v214 = vpop.f32.mrb[0].mxu0
    %v215 = vadd.f32 %v50, %v214
    %v216 = vpop.f32.mrb[0].mxu0
    %217 = vdwg.mxu0
    %v218 = vmax.f32 %v156, 0.0
    %v219 = vmax.f32 %v159, 0.0
    %v220 = vmax.f32 %v164, 0.0
    %v221 = vmax.f32 %v167, 0.0
    %v222 = vmax.f32 %v172, 0.0
    %v223 = vmax.f32 %v175, 0.0
    %v224 = vmax.f32 %v180, 0.0
    %v225 = vmax.f32 %v183, 0.0
    %v226 = vmax.f32 %v188, 0.0
    %v227 = vmax.f32 %v191, 0.0
    %v228 = vmax.f32 %v196, 0.0
    %v229 = vmax.f32 %v199, 0.0
    %v230 = vmax.f32 %v204, 0.0
    %v231 = vmax.f32 %v207, 0.0
    %v232 = vmax.f32 %v212, 0.0
    %v233 = vmax.f32 %v215, 0.0
    %v234 = vpack.c.bf16 %v219, %v218
    %v235 = vpack.c.bf16 %v221, %v220
    %v236 = vpack.c.bf16 %v223, %v222
    %v237 = vpack.c.bf16 %v225, %v224
    %v238 = vpack.c.bf16 %v227, %v226
    %v239 = vpack.c.bf16 %v229, %v228
    %v240 = vpack.c.bf16 %v231, %v230
    %v241 = vpack.c.bf16 %v233, %v232
    %v242 = vld [vmem:[%s3] sm:$0xf]
    %v243 = vld [vmem:[%s3 + $0x4] sm:$0xf]
    %v244 = vld [vmem:[%s3 + $0x8] sm:$0xf]
    %v245 = vld [vmem:[%s3 + $0xc] sm:$0xf]
    %v246 = vld [vmem:[%s3 + $0x10] sm:$0xf]
    %v247 = vld [vmem:[%s3 + $0x14] sm:$0xf]
    %v248 = vld [vmem:[%s3 + $0x18] sm:$0xf]
    %v249 = vld [vmem:[%s3 + $0x1c] sm:$0xf]
    %v250 = vld [vmem:[%s3 + $0x20] sm:$0xf]
    %v251 = vld [vmem:[%s3 + $0x24] sm:$0xf]
    %v252 = vld [vmem:[%s3 + $0x28] sm:$0xf]
    %v253 = vld [vmem:[%s3 + $0x2c] sm:$0xf]
    %v254 = vld [vmem:[%s3 + $0x30] sm:$0xf]
    %v255 = vld [vmem:[%s3 + $0x34] sm:$0xf]
    %v256 = vld [vmem:[%s3 + $0x38] sm:$0xf]
    %v257 = vld [vmem:[%s3 + $0x3c] sm:$0xf]
    %v258 = vld [vmem:[%s4] sm:$0x1]
    %v260 = vlaneseq
    %v261 = vshrl.u32 %v260, 7
    %v262 = vsub.s32 0, %v261
    %v263 = vrot.slane %v258, %v262
    %v281 = vunpack.c.l.b16 %v242
    %v282 = vunpack.c.l.b16 %v243
    %v283 = vunpack.c.l.b16 %v244
    %v284 = vunpack.c.l.b16 %v245
    %v285 = vunpack.c.l.b16 %v246
    %v286 = vunpack.c.l.b16 %v247
    %v287 = vunpack.c.l.b16 %v248
    %v288 = vunpack.c.l.b16 %v249
    %v289 = vunpack.c.l.b16 %v250
    %v290 = vunpack.c.l.b16 %v251
    %v291 = vunpack.c.l.b16 %v252
    %v292 = vunpack.c.l.b16 %v253
    %v293 = vunpack.c.l.b16 %v254
    %v294 = vunpack.c.l.b16 %v255
    %v295 = vunpack.c.l.b16 %v256
    %v296 = vunpack.c.l.b16 %v257
    %v297 = vpack.c.b16 %v282, %v281
    %v298 = vpack.c.b16 %v284, %v283
    %v299 = vpack.c.b16 %v286, %v285
    %v300 = vpack.c.b16 %v288, %v287
    %v301 = vpack.c.b16 %v290, %v289
    %v302 = vpack.c.b16 %v292, %v291
    %v303 = vpack.c.b16 %v294, %v293
    %v304 = vpack.c.b16 %v296, %v295
    %313 = vmatprep.subr.bf16.mxu0 0
    %314 = vmatpush1.bf16.msra.mxu0 %v297
    %315 = vmatprep.subr.bf16.mxu0 0
    %316 = vmatpush1.bf16.msra.mxu0 %v298
    %317 = vmatprep.subr.bf16.mxu0 0
    %318 = vmatpush1.bf16.msra.mxu0 %v299
    %319 = vmatprep.subr.bf16.mxu0 0
    %320 = vmatpush1.bf16.msra.mxu0 %v300
    %321 = vmatprep.subr.bf16.mxu0 0
    %322 = vmatpush1.bf16.msra.mxu0 %v301
    %323 = vmatprep.subr.bf16.mxu0 0
    %324 = vmatpush1.bf16.msra.mxu0 %v302
    %325 = vmatprep.subr.bf16.mxu0 0
    %326 = vmatpush1.bf16.msra.mxu0 %v303
    %327 = vmatprep.subr.bf16.mxu0 0
    %328 = vmatpush1.bf16.msra.mxu0 %v304
    %329 = vmatprep.subr.bf16.mxu0 0
    %330 = vmatpush1.bf16.msra.mxu0 0
    %331 = vmatprep.subr.bf16.mxu0 0
    %332 = vmatpush1.bf16.msra.mxu0 0
    %333 = vmatprep.subr.bf16.mxu0 0
    %334 = vmatpush1.bf16.msra.mxu0 0
    %335 = vmatprep.subr.bf16.mxu0 0
    %336 = vmatpush1.bf16.msra.mxu0 0
    %337 = vmatprep.subr.bf16.mxu0 0
    %338 = vmatpush1.bf16.msra.mxu0 0
    %339 = vmatprep.subr.bf16.mxu0 0
    %340 = vmatpush1.bf16.msra.mxu0 0
    %341 = vmatprep.subr.bf16.mxu0 0
    %342 = vmatpush1.bf16.msra.mxu0 0
    %343 = vmatprep.subr.bf16.mxu0 0
    %344 = vmatpush1.bf16.msra.mxu0 0
    %345 = vmatprep.mubr.bf16.mxu0 0
    %346 = vmatmul.mubr.bf16.gmra.mrb[0].mxu0 %v234
    %v347 = vpop.f32.mrb[0].mxu0
    %v348 = vadd.f32 %v263, %v347
    %v349 = vpop.f32.mrb[0].mxu0
    %v350 = vpop.f32.mrb[0].mxu0
    %v351 = vadd.f32 %v263, %v350
    %v352 = vpop.f32.mrb[0].mxu0
    %353 = vmatprep.mubr.bf16.mxu0 0
    %354 = vmatmul.mubr.bf16.gmra.mrb[0].mxu0 %v235
    %v355 = vpop.f32.mrb[0].mxu0
    %v356 = vadd.f32 %v263, %v355
    %v357 = vpop.f32.mrb[0].mxu0
    %v358 = vpop.f32.mrb[0].mxu0
    %v359 = vadd.f32 %v263, %v358
    %v360 = vpop.f32.mrb[0].mxu0
    %361 = vmatprep.mubr.bf16.mxu0 0
    %362 = vmatmul.mubr.bf16.gmra.mrb[0].mxu0 %v236
    %v363 = vpop.f32.mrb[0].mxu0
    %v364 = vadd.f32 %v263, %v363
    %v365 = vpop.f32.mrb[0].mxu0
    %v366 = vpop.f32.mrb[0].mxu0
    %v367 = vadd.f32 %v263, %v366
    %v368 = vpop.f32.mrb[0].mxu0
    %369 = vmatprep.mubr.bf16.mxu0 0
    %370 = vmatmul.mubr.bf16.gmra.mrb[0].mxu0 %v237
    %v371 = vpop.f32.mrb[0].mxu0
    %v372 = vadd.f32 %v263, %v371
    %v373 = vpop.f32.mrb[0].mxu0
    %v374 = vpop.f32.mrb[0].mxu0
    %v375 = vadd.f32 %v263, %v374
    %v376 = vpop.f32.mrb[0].mxu0
    %377 = vmatprep.mubr.bf16.mxu0 0
    %378 = vmatmul.mubr.bf16.gmra.mrb[0].mxu0 %v238
    %v379 = vpop.f32.mrb[0].mxu0
    %v380 = vadd.f32 %v263, %v379
    %v381 = vpop.f32.mrb[0].mxu0
    %v382 = vpop.f32.mrb[0].mxu0
    %v383 = vadd.f32 %v263, %v382
    %v384 = vpop.f32.mrb[0].mxu0
    %385 = vmatprep.mubr.bf16.mxu0 0
    %386 = vmatmul.mubr.bf16.gmra.mrb[0].mxu0 %v239
    %v387 = vpop.f32.mrb[0].mxu0
    %v388 = vadd.f32 %v263, %v387
    %v389 = vpop.f32.mrb[0].mxu0
    %v390 = vpop.f32.mrb[0].mxu0
    %v391 = vadd.f32 %v263, %v390
    %v392 = vpop.f32.mrb[0].mxu0
    %393 = vmatprep.mubr.bf16.mxu0 0
    %394 = vmatmul.mubr.bf16.gmra.mrb[0].mxu0 %v240
    %v395 = vpop.f32.mrb[0].mxu0
    %v396 = vadd.f32 %v263, %v395
    %v397 = vpop.f32.mrb[0].mxu0
    %v398 = vpop.f32.mrb[0].mxu0
    %v399 = vadd.f32 %v263, %v398
    %v400 = vpop.f32.mrb[0].mxu0
    %401 = vmatprep.mubr.bf16.mxu0 0
    %402 = vmatmul.mubr.bf16.gmra.mrb[0].mxu0 %v241
    %v403 = vpop.f32.mrb[0].mxu0
    %v404 = vadd.f32 %v263, %v403
    %v405 = vpop.f32.mrb[0].mxu0
    %v406 = vpop.f32.mrb[0].mxu0
    %v407 = vadd.f32 %v263, %v406
    %v408 = vpop.f32.mrb[0].mxu0
    %409 = vdwg.mxu0
    %v410 = vmax.f32 %v348, 0.0
    %v411 = vmax.f32 %v351, 0.0
    %v412 = vmax.f32 %v356, 0.0
    %v413 = vmax.f32 %v359, 0.0
    %v414 = vmax.f32 %v364, 0.0
    %v415 = vmax.f32 %v367, 0.0
    %v416 = vmax.f32 %v372, 0.0
    %v417 = vmax.f32 %v375, 0.0
    %v418 = vmax.f32 %v380, 0.0
    %v419 = vmax.f32 %v383, 0.0
    %v420 = vmax.f32 %v388, 0.0
    %v421 = vmax.f32 %v391, 0.0
    %v422 = vmax.f32 %v396, 0.0
    %v423 = vmax.f32 %v399, 0.0
    %v424 = vmax.f32 %v404, 0.0
    %v425 = vmax.f32 %v407, 0.0
    %v426 = vld [vmem:[%s5] sm:$0xf]
    %v427 = vpack.c.bf16 %v411, %v410
    %v428 = vpack.c.bf16 %v413, %v412
    %v429 = vpack.c.bf16 %v415, %v414
    %v430 = vpack.c.bf16 %v417, %v416
    %v431 = vpack.c.bf16 %v419, %v418
    %v432 = vpack.c.bf16 %v421, %v420
    %v433 = vpack.c.bf16 %v423, %v422
    %v434 = vpack.c.bf16 %v425, %v424
    %v435 = vld [vmem:[%s6] sm:$0xff]
    %437 = vset.pattern.permute.xlu0 0
    %438 = vperm.xlu0 %437, %v435
    %v439 = vpop.permute.xlu0 %438
    %441 = vmatprep.subr.bf16.mxu0 0
    %442 = vmatpush1.bf16.xpose.msra.mxu0 %v427
    %443 = vmatprep.subr.bf16.mxu0 0
    %444 = vmatpush1.bf16.xpose.msra.mxu0 %v428
    %445 = vmatprep.subr.bf16.mxu0 0
    %446 = vmatpush1.bf16.xpose.msra.mxu0 %v429
    %447 = vmatprep.subr.bf16.mxu0 0
    %448 = vmatpush1.bf16.xpose.msra.mxu0 %v430
    %449 = vmatprep.subr.bf16.mxu0 0
    %450 = vmatpush1.bf16.xpose.msra.mxu0 %v431
    %451 = vmatprep.subr.bf16.mxu0 0
    %452 = vmatpush1.bf16.xpose.msra.mxu0 %v432
    %453 = vmatprep.subr.bf16.mxu0 0
    %454 = vmatpush1.bf16.xpose.msra.mxu0 %v433
    %455 = vmatprep.subr.bf16.mxu0 0
    %456 = vmatpush1.bf16.xpose.msra.mxu0 %v434
    %457 = vmatprep.subr.bf16.mxu0 0
    %458 = vmatpush1.bf16.xpose.msra.mxu0 0
    %459 = vmatprep.subr.bf16.mxu0 0
    %460 = vmatpush1.bf16.xpose.msra.mxu0 0
    %461 = vmatprep.subr.bf16.mxu0 0
    %462 = vmatpush1.bf16.xpose.msra.mxu0 0
    %463 = vmatprep.subr.bf16.mxu0 0
    %464 = vmatpush1.bf16.xpose.msra.mxu0 0
    %465 = vmatprep.subr.bf16.mxu0 0
    %466 = vmatpush1.bf16.xpose.msra.mxu0 0
    %467 = vmatprep.subr.bf16.mxu0 0
    %468 = vmatpush1.bf16.xpose.msra.mxu0 0
    %469 = vmatprep.subr.bf16.mxu0 0
    %470 = vmatpush1.bf16.xpose.msra.mxu0 0
    %471 = vmatprep.subr.bf16.mxu0 0
    %472 = vmatpush1.bf16.xpose.msra.mxu0 0
    %473 = vmatprep.mubr.bf16.mxu0 0
    %474 = vmatmul.mubr.bf16.gmra.mrb[0].mxu0 %v426
    %v475 = vpop.f32.mrb[0].mxu0
    %v476 = vadd.f32 %v439, %v475
    %v477 = vpop.f32.mrb[0].mxu0
    %v478 = vpop.f32.mrb[0].mxu0
    %v479 = vpop.f32.mrb[0].mxu0
    %480 = vdwg.mxu0
    %481 = vst [vmem:[#allocation2] sm:$0xff] %v476
    // Predicated region
    $region30: #{tpu_custom_call.1} parent=1 // pred_check
      _
    $region31: #{tpu_custom_call.1} parent=1 // pred_check_branch
      %483 = sbr.rel (0) target = $region33
    $region32: #{tpu_custom_call.1} parent=1 // pred_region
      %s485 = ssub.s32 128, 128
      %486 = vsyncadd [#allocation3], %s485
      %s488 = sshll.u32 [#allocation2], 4
      %s489 = int_to_ptr.vmem [resolvable:$true] %s488
      %491 = dma.vmem_to_hbm [thread:$0]  %s489, 128, %s7, [#allocation3]
    $region33: #{tpu_custom_call.1} parent=1 // pred_fallthru
      _
    // Predicated region
    $region34: #{tpu_custom_call.1} parent=1 // pred_check
      _
    $region35: #{tpu_custom_call.1} parent=1 // pred_check_branch
      %493 = sbr.rel (0) target = $region37
    $region36: #{tpu_custom_call.1} parent=1 // pred_region
      %494 = dma.done [#allocation3], 128
    $region37: #{tpu_custom_call.1} parent=1 // pred_fallthru
      _
    %495 = vsyncpa [#allocation3], 1

</llo_original>
